<compile_context>
chip_gen: v5e
topology: v5e:2x2
jax: 0.10.0
libtpu: 0.0.40
codegen_flags: <defaults>
</compile_context>

<pallas_src>
import functools

import jax
import jax.numpy as jnp
from jax.experimental import pallas as pl
from jax.experimental.pallas import tpu as pltpu

# NOTE: keep in-kernel constants as plain Python floats. jnp/np array scalars
# created outside the kernel trace become captured jaxpr consts and raise
# "kernel function captures constants" at pallas_call trace time.
_MASK = -1e30          # additive bias for non-edges (softmax math stays f32)

# MXU input dtype. bf16 inputs + f32 accumulation (preferred_element_type) run
# at MXU peak on v5e/v6e/v7x; set to jnp.float32 for bit-closer parity.
_MM_DTYPE = jnp.bfloat16


def _round_up(x, m):
    return ((x + m - 1) // m) * m


def _pick_tile(n, target, align=128):
    """Largest multiple of `align` dividing n that is <= target (n itself when
    n <= target). n is always padded to a multiple of 128, so this never falls
    back to an unaligned / oversized block."""
    if n <= target:
        return n
    t = max((target // align) * align, align)
    while t > align and n % t:
        t -= align
    return t


# --------------------------- projection kernel ------------------------------
def _gat_proj_kernel(x_ref, w_ref, o_ref):
    """zz = x @ [W | res_W | W@a]  (single wide MXU matmul, f32 accumulate)."""
    o_ref[...] = jnp.dot(x_ref[...], w_ref[...],
                         preferred_element_type=jnp.float32)


# ---------------------------- attention kernel -------------------------------
def _gat_attn_kernel(adj_ref, z_ref, elt_ref, er_ref, *rest, num_heads, out_dim,
                     negative_slope, residual, apply_elu, approx_recip,
                     src_tile, resident_src):
    """Tiled edge-softmax + aggregation with an online-softmax accumulator.

    adj_ref : (Td, Ts) int8 adjacency tile [dst, src]
    z_ref   : (Ts, H*(D+1)) or resident (N, H*(D+1)); per head [z_h | 1] so the
              value matmul also produces the row-sum column.
    elt_ref : (H, Ts) or resident (H, N)   per-head source scores <z_u, a_l>
    er_ref  : (Td, H)                       per-head dest scores   <z_v, a_r>
    res_ref : (Td, H*D)  residual value (only when residual=True)
    out_ref : (Td, H*D)
    m/l/acc : running max / running sum / running weighted sum (VMEM scratch)
    """
    if residual:
        res_ref, out_ref, m_sc, l_sc, acc_sc = rest
    else:
        out_ref, m_sc, l_sc, acc_sc = rest

    j = pl.program_id(1)
    daug = out_dim + 1

    @pl.when(j == 0)
    def _():
        m_sc[...] = jnp.full_like(m_sc, _MASK)
        l_sc[...] = jnp.zeros_like(l_sc)
        acc_sc[...] = jnp.zeros_like(acc_sc)

    adj = adj_ref[...]                                          # (Td, Ts) int8
    if resident_src:
        c0 = pl.multiple_of(j * src_tile, 128)
        z = z_ref[pl.ds(c0, src_tile), :]                       # (Ts, H*(D+1))
        elt = elt_ref[:, pl.ds(c0, src_tile)]                   # (H, Ts)
    else:
        z = z_ref[...]
        elt = elt_ref[...]
    er = er_ref[...]                                            # (Td, H)
    m_prev = m_sc[...]
    l_prev = l_sc[...]

    # hoisted mask: 0 on edges, -1e30 off edges (only masking mechanism;
    # exp(e - m) underflows to exact 0 off-edge once any real edge is seen)
    bias = (adj.astype(jnp.float32) - 1.0) * 1e30               # (Td, Ts)

    td = er.shape[0]
    m_cols, l_cols, scale_cols, contrib_cols = [], [], [], []
    for h in range(num_heads):
        e = er[:, h:h + 1] + elt[h:h + 1, :]                    # (Td, Ts)
        e = jnp.maximum(e, negative_slope * e)                  # LeakyReLU (slope<1)
        e = e + bias                                            # mask non-edges
        m_h = jnp.maximum(m_prev[:, h:h + 1],
                          jnp.max(e, axis=1, keepdims=True))    # (Td, 1)
        p_h = jnp.exp(e - m_h)                                  # off-edge -> 0.0
        corr_h = jnp.exp(m_prev[:, h:h + 1] - m_h)              # (Td, 1)
        z_h = z[:, h * daug:(h + 1) * daug]                     # [z_h | 1] (Ts, D+1)
        ca = jnp.dot(p_h.astype(_MM_DTYPE), z_h.astype(_MM_DTYPE),
                     preferred_element_type=jnp.float32)        # (Td, D+1)
        m_cols.append(m_h)
        l_cols.append(corr_h * l_prev[:, h:h + 1] + ca[:, out_dim:daug])
        scale_cols.append(jnp.broadcast_to(corr_h, (td, out_dim)))
        contrib_cols.append(ca[:, :out_dim])

    # batched scratch updates: one (Td,H) store for m and l, one (Td,H*D) for acc
    m_sc[...] = jnp.concatenate(m_cols, axis=1)
    l_sc[...] = jnp.concatenate(l_cols, axis=1)
    corr_full = jnp.concatenate(scale_cols, axis=1)             # (Td, H*D)
    contrib = jnp.concatenate(contrib_cols, axis=1)             # (Td, H*D)
    acc_sc[...] = corr_full * acc_sc[...] + contrib

    @pl.when(j == pl.num_programs(1) - 1)
    def _():
        # zero in-degree guard: such rows get 0 (+residual) instead of NaN.
        lsum = jnp.maximum(l_sc[...], 1e-20)                    # (Td, H)
        inv = pl.reciprocal(lsum, approx=approx_recip)
        inv_full = jnp.concatenate(
            [jnp.broadcast_to(inv[:, h:h + 1], (td, out_dim))
             for h in range(num_heads)], axis=1)                # (Td, H*D)
        rst = acc_sc[...] * inv_full
        if residual:
            rst = rst + res_ref[...]
        if apply_elu:
            rst = jnp.where(rst > 0, rst, jnp.exp(rst) - 1.0)   # ELU
        out_ref[...] = rst.astype(out_ref.dtype)                # one lane-dense store


# ------------------------------ layer wrapper --------------------------------
def gat_conv_layer(x, w, attn_l, attn_r, adj_i8, res_w, *, num_heads, out_dim,
                   negative_slope, residual, apply_elu, approx_recip=True,
                   dst_tile=256, src_tile=512, row_tile=256):
    """One GATConv layer. x: (N, Fin) f32, adj_i8: (N, N) int8, N % 128 == 0.
    Returns (N, num_heads, out_dim)."""
    n, fin = x.shape
    assert n % 128 == 0, "pad node count to a multiple of 128 (see gat_forward)"
    hd = num_heads * out_dim
    nh2 = 2 * num_heads

    # ---- fold projection + residual projection + score projections ---------
    res_is_identity = residual and (fin == hd)
    fold_res = residual and not res_is_identity

    # block-diagonal attention matrix (H*D, 2H): col h = attn_l[h], col H+h = attn_r[h]
    a_mat = jnp.zeros((hd, nh2), jnp.float32)
    for h in range(num_heads):
        a_mat = a_mat.at[h * out_dim:(h + 1) * out_dim, h].set(attn_l[h])
        a_mat = a_mat.at[h * out_dim:(h + 1) * out_dim, num_heads + h].set(attn_r[h])
    wa = w @ a_mat                                           # (Fin, 2H) tiny
    cols = [w] + ([res_w] if fold_res else []) + [wa]
    wcat = jnp.concatenate(cols, axis=1).astype(_MM_DTYPE)   # bf16 weights (halve DMA)
    x_mm = x.astype(_MM_DTYPE)                               # bf16 activations
    wout = wcat.shape[1]

    rt = _pick_tile(n, row_tile)
    zz = pl.pallas_call(
        _gat_proj_kernel,
        out_shape=jax.ShapeDtypeStruct((n, wout), jnp.float32),
        grid_spec=pltpu.PrefetchScalarGridSpec(
            num_scalar_prefetch=0, grid=(n // rt,),
            in_specs=[pl.BlockSpec((rt, fin), lambda i: (i, 0)),
                      pl.BlockSpec((fin, wout), lambda i: (0, 0))],
            out_specs=pl.BlockSpec((rt, wout), lambda i: (i, 0))),
        compiler_params=pltpu.CompilerParams(dimension_semantics=("parallel",)),
    )(x_mm, wcat)

    z = zz[:, :hd]
    if fold_res:
        resval = zz[:, hd:2 * hd]
    elif res_is_identity:
        resval = x            # DGL Identity res_fc: skip the x @ I matmul entirely
    else:
        resval = None
    scores = zz[:, -nh2:]
    el_t = jnp.transpose(scores[:, :num_heads])              # (H, N) src scores
    er = scores[:, num_heads:]                               # (N, H) dst scores

    # per head [z_h | 1]: the ones column makes the value matmul also emit the
    # row-sum (denominator), removing the XLU row reductions.
    ones = jnp.ones((n, 1), jnp.float32)
    z_aug = jnp.concatenate(
        [jnp.concatenate([z[:, h * out_dim:(h + 1) * out_dim], ones], axis=1)
         for h in range(num_heads)], axis=1).astype(_MM_DTYPE)   # (N, H*(D+1)) bf16
    zw = num_heads * (out_dim + 1)
    mm_b = jnp.dtype(_MM_DTYPE).itemsize

    # ---- attention + aggregation tiling -------------------------------------
    td = _pick_tile(n, dst_tile)
    if n // td < 2 and n >= 256:      # keep >=2 dst tiles so both v7x TCs get work
        td = _pick_tile(n, n // 2)
    ts = _pick_tile(n, src_tile)
    n_src = n // ts

    # keep z / el^T fully VMEM-resident (fetched once) when small enough;
    # otherwise stream per-src-tile blocks.
    resident_src = (n_src > 1) and ((n * zw * mm_b + n * num_heads * 4) <= (4 << 20))

    in_specs = [pl.BlockSpec((td, ts), lambda i, j: (i, j))]             # adj int8
    if resident_src:
        in_specs += [pl.BlockSpec((n, zw), lambda i, j: (0, 0)),         # z resident
                     pl.BlockSpec((num_heads, n), lambda i, j: (0, 0))]  # el^T resident
    else:
        in_specs += [pl.BlockSpec((ts, zw), lambda i, j: (j, 0)),
                     pl.BlockSpec((num_heads, ts), lambda i, j: (0, j))]
    in_specs.append(pl.BlockSpec((td, num_heads), lambda i, j: (i, 0)))  # er
    args = [adj_i8, z_aug, el_t, er]
    if residual:
        in_specs.append(pl.BlockSpec((td, hd), lambda i, j: (i, 0)))
        args.append(resval)

    # rough VMEM footprint (double-buffered inputs/outputs + scratch) -> scoped limit
    def _tile_bytes(r, c, itemsize):
        return _round_up(r, 8) * _round_up(c, 128) * itemsize

    vmem_need = 2 * _tile_bytes(td, ts, 1)                    # adj
    vmem_need += 2 * _tile_bytes(td, num_heads, 4)            # er
    vmem_need += 2 * _tile_bytes(td, hd, 4)                   # out
    if residual:
        vmem_need += 2 * _tile_bytes(td, hd, 4)               # res
    if resident_src:
        vmem_need += _tile_bytes(n, zw, mm_b) + _tile_bytes(num_heads, n, 4)
    else:
        vmem_need += 2 * _tile_bytes(ts, zw, mm_b) + 2 * _tile_bytes(num_heads, ts, 4)
    vmem_need += 2 * _tile_bytes(td, num_heads, 4) + _tile_bytes(td, hd, 4)  # m/l/acc
    # capped at 64 MiB so the value is legal on every generation (v7x physical VMEM);
    # pick smaller dst/src tiles instead of raising this further.
    vmem_limit = int(min(max(vmem_need * 3 // 2, 32 << 20), 64 << 20))

    cost = pl.CostEstimate(
        flops=int(2 * n * n * num_heads * (out_dim + 1) + 6 * n * n * num_heads),
        transcendentals=int(n * n * num_heads),
        bytes_accessed=int(n * n + n * zw * mm_b + 4 * n * (2 * hd + 3 * num_heads)),
    )

    kernel = functools.partial(
        _gat_attn_kernel, num_heads=num_heads, out_dim=out_dim,
        negative_slope=float(negative_slope), residual=residual,
        apply_elu=apply_elu, approx_recip=approx_recip,
        src_tile=ts, resident_src=resident_src)

    out = pl.pallas_call(
        kernel,
        out_shape=jax.ShapeDtypeStruct((n, hd), jnp.float32),
        grid_spec=pltpu.PrefetchScalarGridSpec(
            num_scalar_prefetch=0, grid=(n // td, n_src),
            in_specs=in_specs,
            out_specs=pl.BlockSpec((td, hd), lambda i, j: (i, 0)),
            scratch_shapes=[pltpu.VMEM((td, num_heads), jnp.float32),   # running max
                            pltpu.VMEM((td, num_heads), jnp.float32),   # running sum
                            pltpu.VMEM((td, hd), jnp.float32)]),        # running acc
        compiler_params=pltpu.CompilerParams(
            dimension_semantics=("parallel", "arbitrary"),
            vmem_limit_bytes=vmem_limit),
        cost_estimate=cost,
    )(*args)

    return out.reshape(n, num_heads, out_dim)


def gat_forward(params, adj, x, *, num_layers, negative_slope,
                dst_tile=256, src_tile=512):
    """Mirrors GAT.forward: hidden layers flatten heads, last layer means heads."""
    n = x.shape[0]
    n_pad = _round_up(n, 128)
    if n_pad != n:      # pad nodes to 128 alignment; padded rows/cols are maskless
        x = jnp.pad(x, ((0, n_pad - n), (0, 0)))
        adj = jnp.pad(adj, ((0, n_pad - n), (0, n_pad - n)))
    adj_i8 = (adj != 0).astype(jnp.int8)   # int8 adjacency: 4x less HBM than f32

    h = x
    for l in range(num_layers):
        p = params[l]
        t = gat_conv_layer(h, p["w"], p["attn_l"], p["attn_r"], adj_i8, p["res_w"],
                           num_heads=p["heads"], out_dim=p["out_dim"],
                           negative_slope=negative_slope,
                           residual=p["residual"], apply_elu=True,
                           approx_recip=True,
                           dst_tile=dst_tile, src_tile=src_tile)
        h = t.reshape(t.shape[0], -1)                       # flatten(1)
    p = params[-1]
    t = gat_conv_layer(h, p["w"], p["attn_l"], p["attn_r"], adj_i8, p["res_w"],
                       num_heads=p["heads"], out_dim=p["out_dim"],
                       negative_slope=negative_slope,
                       residual=p["residual"], apply_elu=False,
                       approx_recip=False,   # exact reciprocal on the logits layer
                       dst_tile=dst_tile, src_tile=src_tile)
    return t.mean(axis=1)[:n]                               # mean over heads, unpad


# ---------------- pure-JAX reference (same math, f32, no Pallas) -------------
def _ref_layer(x, p, adj, negative_slope, apply_elu):
    n = x.shape[0]
    H, D = p["heads"], p["out_dim"]
    z = (x @ p["w"]).reshape(n, H, D)
    el = jnp.einsum("nhd,hd->nh", z, p["attn_l"])           # src scores
    er = jnp.einsum("nhd,hd->nh", z, p["attn_r"])           # dst scores
    e = er[:, None, :] + el[None, :, :]                     # (dst, src, H)
    e = jnp.where(e > 0, e, negative_slope * e)
    e = jnp.where(adj[:, :, None] > 0, e, -1e30)
    m = jnp.max(e, axis=1, keepdims=True)
    pmat = jnp.exp(e - m) * adj[:, :, None]
    alpha = pmat / jnp.sum(pmat, axis=1, keepdims=True)
    rst = jnp.einsum("vuh,uhd->vhd", alpha, z)
    if p["residual"]:
        rst = rst + (x @ p["res_w"]).reshape(n, H, D)
    if apply_elu:
        rst = jnp.where(rst > 0, rst, jnp.exp(rst) - 1.0)
    return rst


def gat_forward_ref(params, adj, x, *, num_layers, negative_slope):
    h = x
    for l in range(num_layers):
        t = _ref_layer(h, params[l], adj, negative_slope, True)
        h = t.reshape(t.shape[0], -1)
    t = _ref_layer(h, params[-1], adj, negative_slope, False)
    return t.mean(axis=1)


# --------------------------- parameter construction -------------------------
def make_params(key, *, num_layers, in_dim, num_hidden, num_classes, heads, residual):
    layer_dims = [(in_dim, num_hidden, heads[0], False)]    # first: no residual
    for l in range(1, num_layers):
        layer_dims.append((num_hidden * heads[l - 1], num_hidden, heads[l], residual))
    layer_dims.append((num_hidden * heads[-2], num_classes, heads[-1], residual))

    params = []
    for (fin, dout, h, res) in layer_dims:
        key, k1, k2, k3, k4 = jax.random.split(key, 5)
        w = jax.random.normal(k1, (fin, h * dout), jnp.float32) * (2.0 / fin) ** 0.5
        attn_l = jax.random.normal(k2, (h, dout), jnp.float32) * 0.1
        attn_r = jax.random.normal(k3, (h, dout), jnp.float32) * 0.1
        if res:
            if fin == h * dout:
                res_w = jnp.eye(fin, dtype=jnp.float32)     # DGL Identity case
            else:
                res_w = jax.random.normal(k4, (fin, h * dout), jnp.float32) * (2.0 / fin) ** 0.5
        else:
            res_w = jnp.zeros((fin, h * dout), jnp.float32) # unused
        params.append(dict(w=w, attn_l=attn_l, attn_r=attn_r, res_w=res_w,
                           heads=h, out_dim=dout, residual=res))
    return params


if __name__ == "__main__":
    # Small config: 2 hidden GAT layers + 1 output layer.
    N = 256               # nodes
    IN_DIM = 16
    NUM_HIDDEN = 8
    NUM_CLASSES = 4
    HEADS = [2, 2, 1]
    NUM_LAYERS = 2
    NEG_SLOPE = 0.2
    RESIDUAL = True

    key = jax.random.PRNGKey(0)
    key, kx, ke = jax.random.split(key, 3)

    # node features
    x = jax.random.normal(kx, (N, IN_DIM), jnp.float32)

    # deterministic graph: random sparse edges + self-loops (dense mask, [dst, src])
    adj = (jax.random.uniform(ke, (N, N)) < 0.05).astype(jnp.float32)
    adj = jnp.maximum(adj, jnp.eye(N, dtype=jnp.float32))

    params = make_params(key, num_layers=NUM_LAYERS, in_dim=IN_DIM,
                         num_hidden=NUM_HIDDEN, num_classes=NUM_CLASSES,
                         heads=HEADS, residual=RESIDUAL)

    # pure-JAX f32 reference
    ref = jax.block_until_ready(
        gat_forward_ref(params, adj, x, num_layers=NUM_LAYERS,
                        negative_slope=NEG_SLOPE))
    scale = float(jnp.max(jnp.abs(ref)))
    tol = 6e-2 * (1.0 + scale)   # bf16 MXU inputs + approx reciprocal vs f32 ref

    # config 1: 128x128 attention tiles -> 2x2 grid; exercises online-softmax
    # accumulation across src tiles and the VMEM-resident z / el^T path.
    logits = jax.block_until_ready(
        gat_forward(params, adj, x, num_layers=NUM_LAYERS,
                    negative_slope=NEG_SLOPE, dst_tile=128, src_tile=128))
    assert logits.shape == (N, NUM_CLASSES), logits.shape
    assert bool(jnp.all(jnp.isfinite(logits)))
    err = float(jnp.max(jnp.abs(logits - ref)))
    assert err <= tol, (err, tol)

    # config 2: default tiles -> single src tile per dst tile (streamed-z branch).
    logits2 = jax.block_until_ready(
        gat_forward(params, adj, x, num_layers=NUM_LAYERS,
                    negative_slope=NEG_SLOPE))
    assert bool(jnp.all(jnp.isfinite(logits2)))
    err2 = float(jnp.max(jnp.abs(logits2 - ref)))
    assert err2 <= tol, (err2, tol)

    print("KERNEL_OK")
</pallas_src>

<mosaic_0001>
module attributes {stable_mosaic.version = 11 : i64} {
  func.func @_gat_proj_kernel(%arg0: i32, %arg1: memref<256x16xbf16, #tpu.memory_space<vmem>>, %arg2: memref<16x20xbf16, #tpu.memory_space<vmem>>, %arg3: memref<256x20xf32, #tpu.memory_space<vmem>>) attributes {dimension_semantics = [#tpu.dimension_semantics<parallel>], iteration_bounds = array<i64: 1>, scalar_prefetch = 0 : i64, scratch_operands = 0 : i64, tpu.core_type = #tpu.core_type<tc>, window_params = [{transform_indices = @transform_0, window_bounds = array<i64: 256, 16>}, {pipeline_mode = #tpu.pipeline_mode<synchronous>, transform_indices = @transform_1, window_bounds = array<i64: 16, 20>}, {transform_indices = @transform_2, window_bounds = array<i64: 256, 20>}]} {
    %c0 = arith.constant 0 : index
    %c0_0 = arith.constant 0 : index
    %0 = vector.load %arg1[%c0, %c0_0] : memref<256x16xbf16, #tpu.memory_space<vmem>>, vector<256x16xbf16>
    %c0_1 = arith.constant 0 : index
    %c0_2 = arith.constant 0 : index
    %1 = vector.load %arg2[%c0_1, %c0_2] : memref<16x20xbf16, #tpu.memory_space<vmem>>, vector<16x20xbf16>
    %cst = arith.constant dense<0.000000e+00> : vector<256x20xf32>
    %2 = tpu.matmul %0, %1, %cst {dimension_numbers = #tpu.dot_dimension_numbers<[1], [0], [0], [1], [0, 0, 1, 1], [], []>} : vector<256x16xbf16>, vector<16x20xbf16>, vector<256x20xf32> -> vector<256x20xf32>
    %c0_3 = arith.constant 0 : index
    %c0_4 = arith.constant 0 : index
    %3 = vector.load %arg3[%c0_3, %c0_4] : memref<256x20xf32, #tpu.memory_space<vmem>>, vector<256x20xf32>
    tpu.vector_store %arg3[%c0_3, %c0_4], %2 {strides = array<i32>} : memref<256x20xf32, #tpu.memory_space<vmem>>, vector<256x20xf32>,
    return
  }
  func.func @transform_0(%arg0: i32) -> (i32, i32) {
    %c0_i32 = arith.constant 0 : i32
    %c0_i32_0 = arith.constant 0 : i32
    return %arg0, %c0_i32 : i32, i32
  }
  func.func @transform_1(%arg0: i32) -> (i32, i32) {
    %c0_i32 = arith.constant 0 : i32
    %c0_i32_0 = arith.constant 0 : i32
    %c0_i32_1 = arith.constant 0 : i32
    return %c0_i32, %c0_i32_0 : i32, i32
  }
  func.func @transform_2(%arg0: i32) -> (i32, i32) {
    %c0_i32 = arith.constant 0 : i32
    %c0_i32_0 = arith.constant 0 : i32
    return %arg0, %c0_i32 : i32, i32
  }
}

</mosaic_0001>

<llo_original>
// kernel: tpu_custom_call.1
$region0: #{tpu_custom_call.1}
  #allocation0 [shape = 'u32[]', space=smem, size = 0x4, offset = 0x4, fixed_abs, tag = 'smem constant byte address 0x4 - core index']
  #allocation1 [shape = 'u32[72,128]{1,0:T(1,128)}', space=vmem, size = 0x9000, scoped, tag = 'internal scratch']
  %s0 = inlined_call_operand.vmem [shape: bf16[256,16], index: 0, kind: input, shape index: {}]
  %s1 = inlined_call_operand.vmem [shape: bf16[16,20], index: 1, kind: input, shape index: {}]
  %s2 = inlined_call_operand.vmem [shape: f32[256,20], index: 2, kind: output, shape index: {}]
  %s3 = sld [smem:[#allocation0]]
  $region18: #{tpu_custom_call.1} parent=0
    _
  %s5 = ssub.s32 1, %s3
  %s6 = scalar_select 0, %s5, %s3
  // Predicated region
  $region2: #{tpu_custom_call.1} parent=0 // pred_check
    _
  $region3: #{tpu_custom_call.1} parent=0 // pred_check_branch
    %8 = sbr.rel (0) target = $region5
  $region4: #{tpu_custom_call.1} parent=0 // pred_region
    _
  $region5: #{tpu_custom_call.1} parent=0 // pred_fallthru
    _
  // Predicated region
  $region6: #{tpu_custom_call.1} parent=0 // pred_check
    _
  $region7: #{tpu_custom_call.1} parent=0 // pred_check_branch
    %10 = sbr.rel (0) target = $region9
  $region8: #{tpu_custom_call.1} parent=0 // pred_region
    _
  $region9: #{tpu_custom_call.1} parent=0 // pred_fallthru
    _
  %v12 = vld [vmem:[%s0] sm:$0xf]
  %v13 = vld [vmem:[%s0 + $0x4] sm:$0xf]
  %v14 = vld [vmem:[%s0 + $0x8] sm:$0xf]
  %v15 = vld [vmem:[%s0 + $0xc] sm:$0xf]
  %v16 = vld [vmem:[%s0 + $0x10] sm:$0xf]
  %v17 = vld [vmem:[%s0 + $0x14] sm:$0xf]
  %v18 = vld [vmem:[%s0 + $0x18] sm:$0xf]
  %v19 = vld [vmem:[%s0 + $0x1c] sm:$0xf]
  %v20 = vld [vmem:[%s0 + $0x20] sm:$0xf]
  %v21 = vld [vmem:[%s0 + $0x24] sm:$0xf]
  %v22 = vld [vmem:[%s0 + $0x28] sm:$0xf]
  %v23 = vld [vmem:[%s0 + $0x2c] sm:$0xf]
  %v24 = vld [vmem:[%s0 + $0x30] sm:$0xf]
  %v25 = vld [vmem:[%s0 + $0x34] sm:$0xf]
  %v26 = vld [vmem:[%s0 + $0x38] sm:$0xf]
  %v27 = vld [vmem:[%s0 + $0x3c] sm:$0xf]
  %v28 = vld [vmem:[%s0 + $0x40] sm:$0xf]
  %v29 = vld [vmem:[%s0 + $0x44] sm:$0xf]
  %v30 = vld [vmem:[%s0 + $0x48] sm:$0xf]
  %v31 = vld [vmem:[%s0 + $0x4c] sm:$0xf]
  %v32 = vld [vmem:[%s0 + $0x50] sm:$0xf]
  %v33 = vld [vmem:[%s0 + $0x54] sm:$0xf]
  %v34 = vld [vmem:[%s0 + $0x58] sm:$0xf]
  %v35 = vld [vmem:[%s0 + $0x5c] sm:$0xf]
  %v36 = vld [vmem:[%s0 + $0x60] sm:$0xf]
  %v37 = vld [vmem:[%s0 + $0x64] sm:$0xf]
  %v38 = vld [vmem:[%s0 + $0x68] sm:$0xf]
  %v39 = vld [vmem:[%s0 + $0x6c] sm:$0xf]
  %v40 = vld [vmem:[%s0 + $0x70] sm:$0xf]
  %v41 = vld [vmem:[%s0 + $0x74] sm:$0xf]
  %v42 = vld [vmem:[%s0 + $0x78] sm:$0xf]
  %v43 = vld [vmem:[%s0 + $0x7c] sm:$0xf]
  %v44 = vld [vmem:[%s1] sm:$0xf]
  %v45 = vld [vmem:[%s1 + $0x4] sm:$0xf]
  %v78 = vunpack.c.l.b16 %v12
  %v79 = vunpack.c.l.b16 %v13
  %v80 = vunpack.c.l.b16 %v14
  %v81 = vunpack.c.l.b16 %v15
  %v82 = vunpack.c.l.b16 %v16
  %v83 = vunpack.c.l.b16 %v17
  %v84 = vunpack.c.l.b16 %v18
  %v85 = vunpack.c.l.b16 %v19
  %v86 = vunpack.c.l.b16 %v20
  %v87 = vunpack.c.l.b16 %v21
  %v88 = vunpack.c.l.b16 %v22
  %v89 = vunpack.c.l.b16 %v23
  %v90 = vunpack.c.l.b16 %v24
  %v91 = vunpack.c.l.b16 %v25
  %v92 = vunpack.c.l.b16 %v26
  %v93 = vunpack.c.l.b16 %v27
  %v94 = vunpack.c.l.b16 %v28
  %v95 = vunpack.c.l.b16 %v29
  %v96 = vunpack.c.l.b16 %v30
  %v97 = vunpack.c.l.b16 %v31
  %v98 = vunpack.c.l.b16 %v32
  %v99 = vunpack.c.l.b16 %v33
  %v100 = vunpack.c.l.b16 %v34
  %v101 = vunpack.c.l.b16 %v35
  %v102 = vunpack.c.l.b16 %v36
  %v103 = vunpack.c.l.b16 %v37
  %v104 = vunpack.c.l.b16 %v38
  %v105 = vunpack.c.l.b16 %v39
  %v106 = vunpack.c.l.b16 %v40
  %v107 = vunpack.c.l.b16 %v41
  %v108 = vunpack.c.l.b16 %v42
  %v109 = vunpack.c.l.b16 %v43
  %v110 = vpack.c.b16 %v79, %v78
  %v111 = vpack.c.b16 %v81, %v80
  %v112 = vpack.c.b16 %v83, %v82
  %v113 = vpack.c.b16 %v85, %v84
  %v114 = vpack.c.b16 %v87, %v86
  %v115 = vpack.c.b16 %v89, %v88
  %v116 = vpack.c.b16 %v91, %v90
  %v117 = vpack.c.b16 %v93, %v92
  %v118 = vpack.c.b16 %v95, %v94
  %v119 = vpack.c.b16 %v97, %v96
  %v120 = vpack.c.b16 %v99, %v98
  %v121 = vpack.c.b16 %v101, %v100
  %v122 = vpack.c.b16 %v103, %v102
  %v123 = vpack.c.b16 %v105, %v104
  %v124 = vpack.c.b16 %v107, %v106
  %v125 = vpack.c.b16 %v109, %v108
  %v128 = vunpack.c.l.b16 %v44
  %v129 = vunpack.c.l.b16 %v45
  %v130 = vpack.c.b16 %v129, %v128
  %vm132 = vcmask 130048
  %v134 = vsel %vm132, %v110, 0
  %v137 = vsel %vm132, %v111, 0
  %v140 = vsel %vm132, %v112, 0
  %v143 = vsel %vm132, %v113, 0
  %v146 = vsel %vm132, %v114, 0
  %v149 = vsel %vm132, %v115, 0
  %v152 = vsel %vm132, %v116, 0
  %v155 = vsel %vm132, %v117, 0
  %v158 = vsel %vm132, %v118, 0
  %v161 = vsel %vm132, %v119, 0
  %v164 = vsel %vm132, %v120, 0
  %v167 = vsel %vm132, %v121, 0
  %v170 = vsel %vm132, %v122, 0
  %v173 = vsel %vm132, %v123, 0
  %v176 = vsel %vm132, %v124, 0
  %v179 = vsel %vm132, %v125, 0
  %181 = vmatpush.bf16.msra.mxu0 0
  %182 = vmatpush.bf16.msra.mxu0 0
  %183 = vmatpush.bf16.msra.mxu0 0
  %184 = vmatpush.bf16.msra.mxu0 0
  %185 = vmatpush.bf16.msra.mxu0 0
  %186 = vmatpush.bf16.msra.mxu0 0
  %187 = vmatpush.bf16.msra.mxu0 0
  %188 = vmatpush.bf16.msra.mxu0 %v130
  %189 = vmatmul.bf16.gmra.mxu0 %v134
  %v190 = vpop.f32.mrf.mxu0
  %v191 = vadd.f32 0.0, %v190
  %v192 = vpop.f32.mrf.mxu0
  %v193 = vadd.f32 0.0, %v192
  %194 = vmatmul.bf16.gmra.mxu0 %v137
  %v195 = vpop.f32.mrf.mxu0
  %v196 = vadd.f32 0.0, %v195
  %v197 = vpop.f32.mrf.mxu0
  %v198 = vadd.f32 0.0, %v197
  %199 = vmatmul.bf16.gmra.mxu0 %v140
  %v200 = vpop.f32.mrf.mxu0
  %v201 = vadd.f32 0.0, %v200
  %v202 = vpop.f32.mrf.mxu0
  %v203 = vadd.f32 0.0, %v202
  %204 = vmatmul.bf16.gmra.mxu0 %v143
  %v205 = vpop.f32.mrf.mxu0
  %v206 = vadd.f32 0.0, %v205
  %v207 = vpop.f32.mrf.mxu0
  %v208 = vadd.f32 0.0, %v207
  %209 = vmatmul.bf16.gmra.mxu0 %v146
  %v210 = vpop.f32.mrf.mxu0
  %v211 = vadd.f32 0.0, %v210
  %v212 = vpop.f32.mrf.mxu0
  %v213 = vadd.f32 0.0, %v212
  %214 = vmatmul.bf16.gmra.mxu0 %v149
  %v215 = vpop.f32.mrf.mxu0
  %v216 = vadd.f32 0.0, %v215
  %v217 = vpop.f32.mrf.mxu0
  %v218 = vadd.f32 0.0, %v217
  %219 = vmatmul.bf16.gmra.mxu0 %v152
  %v220 = vpop.f32.mrf.mxu0
  %v221 = vadd.f32 0.0, %v220
  %v222 = vpop.f32.mrf.mxu0
  %v223 = vadd.f32 0.0, %v222
  %224 = vmatmul.bf16.gmra.mxu0 %v155
  %v225 = vpop.f32.mrf.mxu0
  %v226 = vadd.f32 0.0, %v225
  %v227 = vpop.f32.mrf.mxu0
  %v228 = vadd.f32 0.0, %v227
  %229 = vmatmul.bf16.gmra.mxu0 %v158
  %v230 = vpop.f32.mrf.mxu0
  %v231 = vadd.f32 0.0, %v230
  %v232 = vpop.f32.mrf.mxu0
  %v233 = vadd.f32 0.0, %v232
  %234 = vmatmul.bf16.gmra.mxu0 %v161
  %v235 = vpop.f32.mrf.mxu0
  %v236 = vadd.f32 0.0, %v235
  %v237 = vpop.f32.mrf.mxu0
  %v238 = vadd.f32 0.0, %v237
  %239 = vmatmul.bf16.gmra.mxu0 %v164
  %v240 = vpop.f32.mrf.mxu0
  %v241 = vadd.f32 0.0, %v240
  %v242 = vpop.f32.mrf.mxu0
  %v243 = vadd.f32 0.0, %v242
  %244 = vmatmul.bf16.gmra.mxu0 %v167
  %v245 = vpop.f32.mrf.mxu0
  %v246 = vadd.f32 0.0, %v245
  %v247 = vpop.f32.mrf.mxu0
  %v248 = vadd.f32 0.0, %v247
  %249 = vmatmul.bf16.gmra.mxu0 %v170
  %v250 = vpop.f32.mrf.mxu0
  %v251 = vadd.f32 0.0, %v250
  %v252 = vpop.f32.mrf.mxu0
  %v253 = vadd.f32 0.0, %v252
  %254 = vmatmul.bf16.gmra.mxu0 %v173
  %v255 = vpop.f32.mrf.mxu0
  %v256 = vadd.f32 0.0, %v255
  %v257 = vpop.f32.mrf.mxu0
  %v258 = vadd.f32 0.0, %v257
  %259 = vmatmul.bf16.gmra.mxu0 %v176
  %v260 = vpop.f32.mrf.mxu0
  %v261 = vadd.f32 0.0, %v260
  %v262 = vpop.f32.mrf.mxu0
  %v263 = vadd.f32 0.0, %v262
  %264 = vmatmul.bf16.gmra.mxu0 %v179
  %v265 = vpop.f32.mrf.mxu0
  %v266 = vadd.f32 0.0, %v265
  %v267 = vpop.f32.mrf.mxu0
  %v268 = vadd.f32 0.0, %v267
  %269 = vdwg.mxu0
  %vm270 = vcmask 162816
  %271 = vst.msk [vmem:[%s2] sm:$0xff] %vm270, %v191
  %272 = vst.msk [vmem:[%s2 + $0x8] sm:$0xff] %vm270, %v193
  %273 = vst.msk [vmem:[%s2 + $0x10] sm:$0xff] %vm270, %v196
  %274 = vst.msk [vmem:[%s2 + $0x18] sm:$0xff] %vm270, %v198
  %275 = vst.msk [vmem:[%s2 + $0x20] sm:$0xff] %vm270, %v201
  %276 = vst.msk [vmem:[%s2 + $0x28] sm:$0xff] %vm270, %v203
  %277 = vst.msk [vmem:[%s2 + $0x30] sm:$0xff] %vm270, %v206
  %278 = vst.msk [vmem:[%s2 + $0x38] sm:$0xff] %vm270, %v208
  %279 = vst.msk [vmem:[%s2 + $0x40] sm:$0xff] %vm270, %v211
  %280 = vst.msk [vmem:[%s2 + $0x48] sm:$0xff] %vm270, %v213
  %281 = vst.msk [vmem:[%s2 + $0x50] sm:$0xff] %vm270, %v216
  %282 = vst.msk [vmem:[%s2 + $0x58] sm:$0xff] %vm270, %v218
  %283 = vst.msk [vmem:[%s2 + $0x60] sm:$0xff] %vm270, %v221
  %284 = vst.msk [vmem:[%s2 + $0x68] sm:$0xff] %vm270, %v223
  %285 = vst.msk [vmem:[%s2 + $0x70] sm:$0xff] %vm270, %v226
  %286 = vst.msk [vmem:[%s2 + $0x78] sm:$0xff] %vm270, %v228
  %287 = vst.msk [vmem:[%s2 + $0x80] sm:$0xff] %vm270, %v231
  %288 = vst.msk [vmem:[%s2 + $0x88] sm:$0xff] %vm270, %v233
  %289 = vst.msk [vmem:[%s2 + $0x90] sm:$0xff] %vm270, %v236
  %290 = vst.msk [vmem:[%s2 + $0x98] sm:$0xff] %vm270, %v238
  %291 = vst.msk [vmem:[%s2 + $0xa0] sm:$0xff] %vm270, %v241
  %292 = vst.msk [vmem:[%s2 + $0xa8] sm:$0xff] %vm270, %v243
  %293 = vst.msk [vmem:[%s2 + $0xb0] sm:$0xff] %vm270, %v246
  %294 = vst.msk [vmem:[%s2 + $0xb8] sm:$0xff] %vm270, %v248
  %295 = vst.msk [vmem:[%s2 + $0xc0] sm:$0xff] %vm270, %v251
  %296 = vst.msk [vmem:[%s2 + $0xc8] sm:$0xff] %vm270, %v253
  %297 = vst.msk [vmem:[%s2 + $0xd0] sm:$0xff] %vm270, %v256
  %298 = vst.msk [vmem:[%s2 + $0xd8] sm:$0xff] %vm270, %v258
  %299 = vst.msk [vmem:[%s2 + $0xe0] sm:$0xff] %vm270, %v261
  %300 = vst.msk [vmem:[%s2 + $0xe8] sm:$0xff] %vm270, %v263
  %301 = vst.msk [vmem:[%s2 + $0xf0] sm:$0xff] %vm270, %v266
  %302 = vst.msk [vmem:[%s2 + $0xf8] sm:$0xff] %vm270, %v268
  // Predicated region
  $region10: #{tpu_custom_call.1} parent=0 // pred_check
    _
  $region11: #{tpu_custom_call.1} parent=0 // pred_check_branch
    %304 = sbr.rel (0) target = $region13
  $region12: #{tpu_custom_call.1} parent=0 // pred_region
    _
  $region13: #{tpu_custom_call.1} parent=0 // pred_fallthru
    _
  // Predicated region
  $region14: #{tpu_custom_call.1} parent=0 // pred_check
    _
  $region15: #{tpu_custom_call.1} parent=0 // pred_check_branch
    %306 = sbr.rel (0) target = $region17
  $region16: #{tpu_custom_call.1} parent=0 // pred_region
    _
  $region17: #{tpu_custom_call.1} parent=0 // pred_fallthru
    _

</llo_original>
